<compile_context>
chip_gen: v5e
topology: v5e:2x2
jax: 0.10.0
libtpu: 0.0.40
codegen_flags: <defaults>
</compile_context>

<pallas_src>
import math

import jax
import jax.numpy as jnp
from jax.experimental import pallas as pl
from jax.experimental.pallas import tpu as pltpu


def _round_up(x, m):
    return ((x + m - 1) // m) * m


def _choose_tile(dim, preferred, granule):
    """Return (padded_dim, tile) with tile % granule == 0 and padded % tile == 0."""
    padded = _round_up(dim, granule)
    tile = min(_round_up(preferred, granule), padded)
    padded = _round_up(padded, tile)
    return padded, tile


def _pad2(a, rows, cols):
    return jnp.pad(a, ((0, rows - a.shape[0]), (0, cols - a.shape[1])))


# ----------------------------- kernels -------------------------------------


def _noisy_linear_kernel(x_ref, wT_ref, swT_ref, fin_ref, fout_ref, b_ref,
                         o_ref, acc_w, acc_s):
    k = pl.program_id(2)

    @pl.when(k == 0)
    def _():
        acc_w[...] = jnp.zeros_like(acc_w)
        acc_s[...] = jnp.zeros_like(acc_s)

    x = x_ref[...]                                            # (tm, tk)
    # main path: x @ W^T
    acc_w[...] += jnp.dot(x, wT_ref[...], preferred_element_type=jnp.float32)
    # noise path: (x * f_in) @ sigma_w^T   (rank-1 eps_w folded into the GEMM)
    acc_s[...] += jnp.dot(x * fin_ref[...], swT_ref[...],
                          preferred_element_type=jnp.float32)

    @pl.when(k == pl.num_programs(2) - 1)
    def _():
        o_ref[...] = (acc_w[...] + fout_ref[...] * acc_s[...]
                      + b_ref[...]).astype(o_ref.dtype)


def _linear_kernel(x_ref, wT_ref, b_ref, o_ref, acc):
    k = pl.program_id(2)

    @pl.when(k == 0)
    def _():
        acc[...] = jnp.zeros_like(acc)

    acc[...] += jnp.dot(x_ref[...], wT_ref[...],
                        preferred_element_type=jnp.float32)

    @pl.when(k == pl.num_programs(2) - 1)
    def _():
        o_ref[...] = (acc[...] + b_ref[...]).astype(o_ref.dtype)


# ----------------------------- wrapper --------------------------------------


def noisy_linear(x, weight, sigma_w, bias, sigma_b, rand_in, rand_out, *,
                 training=True, tm=128, tn=256, tk=512):
    """Pallas-backed NoisyLinear forward.

    x:        (B, in)   float32
    weight:   (out, in) float32      sigma_w: (out, in) float32
    bias:     (out,)    float32      sigma_b: (out,)    float32
    rand_in:  (1, in)   raw N(0,1)   rand_out: (out, 1) raw N(0,1)
    """
    B, K = x.shape
    N = weight.shape[0]
    dtype = x.dtype

    M_pad, tm = _choose_tile(B, tm, 8)      # sublane granularity
    N_pad, tn = _choose_tile(N, tn, 128)    # lane granularity
    K_pad, tk = _choose_tile(K, tk, 128)    # lane granularity (x's last dim)
    grid = (M_pad // tm, N_pad // tn, K_pad // tk)

    # One-time layout prep in plain JAX: transpose to (in, out) so the kernel
    # contracts without an in-kernel transpose, and zero-pad to tile multiples.
    x_p = _pad2(x, M_pad, K_pad)
    wT_p = _pad2(weight.T, K_pad, N_pad)

    # Double-buffered input tiles + output + accumulators (generous estimate).
    est = 2 * 4 * (tm * tk + 2 * tk * tn + tk + 2 * tn + tm * tn) + 2 * 4 * tm * tn
    vmem_limit = int(min(64 * 1024 * 1024, max(4 * est, 32 * 1024 * 1024)))
    cparams = pltpu.CompilerParams(
        dimension_semantics=("parallel", "parallel", "arbitrary"),
        vmem_limit_bytes=vmem_limit)

    out_shape = jax.ShapeDtypeStruct((M_pad, N_pad), dtype)
    x_spec = pl.BlockSpec((tm, tk), lambda i, j, k: (i, k))
    w_spec = pl.BlockSpec((tk, tn), lambda i, j, k: (k, j))
    row_k_spec = pl.BlockSpec((1, tk), lambda i, j, k: (0, k))
    row_n_spec = pl.BlockSpec((1, tn), lambda i, j, k: (0, j))
    out_spec = pl.BlockSpec((tm, tn), lambda i, j, k: (i, j))

    if training:
        # Tiny vector work done once in the wrapper (f applied, noisy bias).
        f = lambda e: jnp.sign(e) * jnp.sqrt(jnp.abs(e))
        f_in = f(rand_in).reshape(1, K).astype(dtype)          # (1, K)
        f_out = f(rand_out).reshape(1, N).astype(dtype)        # (1, N)
        b_noisy = (bias + sigma_b * f_out[0]).reshape(1, N).astype(dtype)

        swT_p = _pad2(sigma_w.T, K_pad, N_pad)
        f_in_p = _pad2(f_in, 1, K_pad)
        f_out_p = _pad2(f_out, 1, N_pad)
        b_p = _pad2(b_noisy, 1, N_pad)

        out_p = pl.pallas_call(
            _noisy_linear_kernel,
            out_shape=out_shape,
            grid_spec=pltpu.PrefetchScalarGridSpec(
                num_scalar_prefetch=0,
                grid=grid,
                in_specs=[x_spec, w_spec, w_spec, row_k_spec,
                          row_n_spec, row_n_spec],
                out_specs=out_spec,
                scratch_shapes=[pltpu.VMEM((tm, tn), jnp.float32),
                                pltpu.VMEM((tm, tn), jnp.float32)]),
            compiler_params=cparams,
        )(x_p, wT_p, swT_p, f_in_p, f_out_p, b_p)
    else:
        # Eval: plain linear kernel — sigma_w is never streamed from HBM.
        b_p = _pad2(bias.reshape(1, N).astype(dtype), 1, N_pad)
        out_p = pl.pallas_call(
            _linear_kernel,
            out_shape=out_shape,
            grid_spec=pltpu.PrefetchScalarGridSpec(
                num_scalar_prefetch=0,
                grid=grid,
                in_specs=[x_spec, w_spec, row_n_spec],
                out_specs=out_spec,
                scratch_shapes=[pltpu.VMEM((tm, tn), jnp.float32)]),
            compiler_params=cparams,
        )(x_p, wT_p, b_p)

    return out_p[:B, :N]


# ----------------------------- reference ------------------------------------


def noisy_linear_ref(x, weight, sigma_w, bias, sigma_b, rand_in, rand_out, *,
                     training=True):
    """Pure-JAX reference mirroring the PyTorch forward exactly."""
    f = lambda e: jnp.sign(e) * jnp.sqrt(jnp.abs(e))
    if training:
        f_in = f(rand_in)            # (1, in)
        f_out = f(rand_out)          # (out, 1)
        eps_w = f_out @ f_in         # (out, in)
        eps_b = f_out[:, 0]          # (out,)
        w = weight + sigma_w * eps_w
        b = bias + sigma_b * eps_b
    else:
        w, b = weight, bias
    return x @ w.T + b[None, :]


# ----------------------------- test -----------------------------------------


def _make_case(key, batch, in_features, out_features):
    k_w, k_b, k_x, k_rin, k_rout = jax.random.split(key, 5)
    stdv = 1.0 / math.sqrt(in_features)
    weight = jax.random.uniform(k_w, (out_features, in_features),
                                minval=-stdv, maxval=stdv, dtype=jnp.float32)
    bias = jax.random.uniform(k_b, (out_features,),
                              minval=-stdv, maxval=stdv, dtype=jnp.float32)
    sigma_w = jnp.full((out_features, in_features), 0.5 * stdv, jnp.float32)
    sigma_b = jnp.full((out_features,), 0.5 * stdv, jnp.float32)
    x = jax.random.normal(k_x, (batch, in_features), dtype=jnp.float32)
    rand_in = jax.random.normal(k_rin, (1, in_features), dtype=jnp.float32)
    rand_out = jax.random.normal(k_rout, (out_features, 1), dtype=jnp.float32)
    return x, weight, sigma_w, bias, sigma_b, rand_in, rand_out


if __name__ == "__main__":
    key = jax.random.PRNGKey(0)
    k1, k2 = jax.random.split(key)

    # Case 1: tiny layer matching the module's typical RL-head sizes
    # (exercises the padding path: in=32, out=64 padded to 128).
    case1 = _make_case(k1, batch=8, in_features=32, out_features=64)
    # Case 2: multi-tile grid (exercises k-accumulation and parallel M/N axes).
    case2 = _make_case(k2, batch=16, in_features=384, out_features=512)

    ok = True
    for (args, tiles) in ((case1, dict()),
                          (case2, dict(tm=128, tn=128, tk=128))):
        for training in (True, False):
            y = noisy_linear(*args, training=training, **tiles)
            y = jax.block_until_ready(y)
            y_ref = noisy_linear_ref(*args, training=training)
            ok = ok and bool(jnp.allclose(y, y_ref, atol=2e-5, rtol=2e-5))

    assert ok, "mismatch vs pure-JAX reference"
    print("KERNEL_OK")
</pallas_src>

<mosaic_0001>
module attributes {stable_mosaic.version = 11 : i64} {
  func.func @_noisy_linear_kernel(%arg0: i32, %arg1: i32, %arg2: i32, %arg3: memref<8x128xf32, #tpu.memory_space<vmem>>, %arg4: memref<128x128xf32, #tpu.memory_space<vmem>>, %arg5: memref<128x128xf32, #tpu.memory_space<vmem>>, %arg6: memref<1x128xf32, #tpu.memory_space<vmem>>, %arg7: memref<1x128xf32, #tpu.memory_space<vmem>>, %arg8: memref<1x128xf32, #tpu.memory_space<vmem>>, %arg9: memref<8x128xf32, #tpu.memory_space<vmem>>, %arg10: memref<8x128xf32, #tpu.memory_space<vmem>>, %arg11: memref<8x128xf32, #tpu.memory_space<vmem>>) attributes {dimension_semantics = [#tpu.dimension_semantics<parallel>, #tpu.dimension_semantics<parallel>, #tpu.dimension_semantics<arbitrary>], iteration_bounds = array<i64: 1, 1, 1>, scalar_prefetch = 0 : i64, scratch_operands = 2 : i64, tpu.core_type = #tpu.core_type<tc>, window_params = [{transform_indices = @transform_0, window_bounds = array<i64: 8, 128>}, {transform_indices = @transform_1, window_bounds = array<i64: 128, 128>}, {transform_indices = @transform_2, window_bounds = array<i64: 128, 128>}, {transform_indices = @transform_3, window_bounds = array<i64: 1, 128>}, {transform_indices = @transform_4, window_bounds = array<i64: 1, 128>}, {transform_indices = @transform_5, window_bounds = array<i64: 1, 128>}, {transform_indices = @transform_6, window_bounds = array<i64: 8, 128>}]} {
    %c0_i32 = arith.constant 0 : i32
    %0 = arith.cmpi eq, %arg2, %c0_i32 : i32
    %1 = arith.extui %0 : i1 to i32
    %c0_i32_0 = arith.constant 0 : i32
    %2 = arith.cmpi ne, %1, %c0_i32_0 : i32
    scf.if %2 {
      %cst_19 = arith.constant 0.000000e+00 : f32
      %20 = vector.broadcast %cst_19 : f32 to vector<8x128xf32>
      %c0_20 = arith.constant 0 : index
      %c0_21 = arith.constant 0 : index
      %21 = vector.load %arg10[%c0_20, %c0_21] : memref<8x128xf32, #tpu.memory_space<vmem>>, vector<8x128xf32>
      tpu.vector_store %arg10[%c0_20, %c0_21], %20 {strides = array<i32>} : memref<8x128xf32, #tpu.memory_space<vmem>>, vector<8x128xf32>,
      %cst_22 = arith.constant 0.000000e+00 : f32
      %22 = vector.broadcast %cst_22 : f32 to vector<8x128xf32>
      %c0_23 = arith.constant 0 : index
      %c0_24 = arith.constant 0 : index
      %23 = vector.load %arg11[%c0_23, %c0_24] : memref<8x128xf32, #tpu.memory_space<vmem>>, vector<8x128xf32>
      tpu.vector_store %arg11[%c0_23, %c0_24], %22 {strides = array<i32>} : memref<8x128xf32, #tpu.memory_space<vmem>>, vector<8x128xf32>,
    } else {
    }
    %c0 = arith.constant 0 : index
    %c0_1 = arith.constant 0 : index
    %3 = vector.load %arg3[%c0, %c0_1] : memref<8x128xf32, #tpu.memory_space<vmem>>, vector<8x128xf32>
    %c0_2 = arith.constant 0 : index
    %c0_3 = arith.constant 0 : index
    %4 = vector.load %arg10[%c0_2, %c0_3] : memref<8x128xf32, #tpu.memory_space<vmem>>, vector<8x128xf32>
    %c0_4 = arith.constant 0 : index
    %c0_5 = arith.constant 0 : index
    %5 = vector.load %arg4[%c0_4, %c0_5] : memref<128x128xf32, #tpu.memory_space<vmem>>, vector<128x128xf32>
    %cst = arith.constant dense<0.000000e+00> : vector<8x128xf32>
    %6 = tpu.matmul %3, %5, %cst {dimension_numbers = #tpu.dot_dimension_numbers<[1], [0], [0], [1], [0, 0, 1, 1], [], []>} : vector<8x128xf32>, vector<128x128xf32>, vector<8x128xf32> -> vector<8x128xf32>
    %7 = arith.addf %4, %6 : vector<8x128xf32>
    %c0_6 = arith.constant 0 : index
    %c0_7 = arith.constant 0 : index
    %8 = vector.load %arg10[%c0_6, %c0_7] : memref<8x128xf32, #tpu.memory_space<vmem>>, vector<8x128xf32>
    tpu.vector_store %arg10[%c0_6, %c0_7], %7 {strides = array<i32>} : memref<8x128xf32, #tpu.memory_space<vmem>>, vector<8x128xf32>,
    %c0_8 = arith.constant 0 : index
    %c0_9 = arith.constant 0 : index
    %9 = vector.load %arg11[%c0_8, %c0_9] : memref<8x128xf32, #tpu.memory_space<vmem>>, vector<8x128xf32>
    %c0_10 = arith.constant 0 : index
    %c0_11 = arith.constant 0 : index
    %10 = vector.load %arg6[%c0_10, %c0_11] : memref<1x128xf32, #tpu.memory_space<vmem>>, vector<1x128xf32>
    %11 = vector.broadcast %10 : vector<1x128xf32> to vector<8x128xf32>
    %12 = arith.mulf %3, %11 : vector<8x128xf32>
    %c0_12 = arith.constant 0 : index
    %c0_13 = arith.constant 0 : index
    %13 = vector.load %arg5[%c0_12, %c0_13] : memref<128x128xf32, #tpu.memory_space<vmem>>, vector<128x128xf32>
    %cst_14 = arith.constant dense<0.000000e+00> : vector<8x128xf32>
    %14 = tpu.matmul %12, %13, %cst_14 {dimension_numbers = #tpu.dot_dimension_numbers<[1], [0], [0], [1], [0, 0, 1, 1], [], []>} : vector<8x128xf32>, vector<128x128xf32>, vector<8x128xf32> -> vector<8x128xf32>
    %15 = arith.addf %9, %14 : vector<8x128xf32>
    %c0_15 = arith.constant 0 : index
    %c0_16 = arith.constant 0 : index
    %16 = vector.load %arg11[%c0_15, %c0_16] : memref<8x128xf32, #tpu.memory_space<vmem>>, vector<8x128xf32>
    tpu.vector_store %arg11[%c0_15, %c0_16], %15 {strides = array<i32>} : memref<8x128xf32, #tpu.memory_space<vmem>>, vector<8x128xf32>,
    %c0_i32_17 = arith.constant 0 : i32
    %17 = arith.cmpi eq, %arg2, %c0_i32_17 : i32
    %18 = arith.extui %17 : i1 to i32
    %c0_i32_18 = arith.constant 0 : i32
    %19 = arith.cmpi ne, %18, %c0_i32_18 : i32
    scf.if %19 {
      %c0_19 = arith.constant 0 : index
      %c0_20 = arith.constant 0 : index
      %20 = vector.load %arg10[%c0_19, %c0_20] : memref<8x128xf32, #tpu.memory_space<vmem>>, vector<8x128xf32>
      %c0_21 = arith.constant 0 : index
      %c0_22 = arith.constant 0 : index
      %21 = vector.load %arg7[%c0_21, %c0_22] : memref<1x128xf32, #tpu.memory_space<vmem>>, vector<1x128xf32>
      %c0_23 = arith.constant 0 : index
      %c0_24 = arith.constant 0 : index
      %22 = vector.load %arg11[%c0_23, %c0_24] : memref<8x128xf32, #tpu.memory_space<vmem>>, vector<8x128xf32>
      %23 = vector.broadcast %21 : vector<1x128xf32> to vector<8x128xf32>
      %24 = arith.mulf %23, %22 : vector<8x128xf32>
      %25 = arith.addf %20, %24 : vector<8x128xf32>
      %c0_25 = arith.constant 0 : index
      %c0_26 = arith.constant 0 : index
      %26 = vector.load %arg8[%c0_25, %c0_26] : memref<1x128xf32, #tpu.memory_space<vmem>>, vector<1x128xf32>
      %27 = vector.broadcast %26 : vector<1x128xf32> to vector<8x128xf32>
      %28 = arith.addf %25, %27 : vector<8x128xf32>
      %c0_27 = arith.constant 0 : index
      %c0_28 = arith.constant 0 : index
      %29 = vector.load %arg9[%c0_27, %c0_28] : memref<8x128xf32, #tpu.memory_space<vmem>>, vector<8x128xf32>
      tpu.vector_store %arg9[%c0_27, %c0_28], %28 {strides = array<i32>} : memref<8x128xf32, #tpu.memory_space<vmem>>, vector<8x128xf32>,
    } else {
    }
    return
  }
  func.func @transform_0(%arg0: i32, %arg1: i32, %arg2: i32) -> (i32, i32) {
    %c0_i32 = arith.constant 0 : i32
    return %arg0, %arg2 : i32, i32
  }
  func.func @transform_1(%arg0: i32, %arg1: i32, %arg2: i32) -> (i32, i32) {
    %c0_i32 = arith.constant 0 : i32
    return %arg2, %arg1 : i32, i32
  }
  func.func @transform_2(%arg0: i32, %arg1: i32, %arg2: i32) -> (i32, i32) {
    %c0_i32 = arith.constant 0 : i32
    return %arg2, %arg1 : i32, i32
  }
  func.func @transform_3(%arg0: i32, %arg1: i32, %arg2: i32) -> (i32, i32) {
    %c0_i32 = arith.constant 0 : i32
    %c0_i32_0 = arith.constant 0 : i32
    return %c0_i32, %arg2 : i32, i32
  }
  func.func @transform_4(%arg0: i32, %arg1: i32, %arg2: i32) -> (i32, i32) {
    %c0_i32 = arith.constant 0 : i32
    %c0_i32_0 = arith.constant 0 : i32
    return %c0_i32, %arg1 : i32, i32
  }
  func.func @transform_5(%arg0: i32, %arg1: i32, %arg2: i32) -> (i32, i32) {
    %c0_i32 = arith.constant 0 : i32
    %c0_i32_0 = arith.constant 0 : i32
    return %c0_i32, %arg1 : i32, i32
  }
  func.func @transform_6(%arg0: i32, %arg1: i32, %arg2: i32) -> (i32, i32) {
    %c0_i32 = arith.constant 0 : i32
    return %arg0, %arg1 : i32, i32
  }
}

</mosaic_0001>

<llo_original>
// kernel: tpu_custom_call.1
$region0: #{tpu_custom_call.1}
  #allocation0 [shape = 'u32[]', space=smem, size = 0x4, offset = 0x4, fixed_abs, tag = 'smem constant byte address 0x4 - core index']
  #allocation1 [shape = 'u32[72,128]{1,0:T(1,128)}', space=vmem, size = 0x9000, scoped, tag = 'internal scratch']
  #allocation2 [shape = 'f32[8,128]{1,0:T(8,128)}', space=vmem, size = 0x1000, scoped, tag = 'scratch operand']
  #allocation3 [shape = 'f32[8,128]{1,0:T(8,128)}', space=vmem, size = 0x1000, scoped, tag = 'scratch operand']
  %s0 = inlined_call_operand.hbm [shape: f32[8,128], index: 0, kind: input, shape index: {}]
  %s1 = inlined_call_operand.hbm [shape: f32[128,128], index: 1, kind: input, shape index: {}]
  %s2 = inlined_call_operand.hbm [shape: f32[128,128], index: 2, kind: input, shape index: {}]
  %s3 = inlined_call_operand.vmem [shape: f32[1,128], index: 3, kind: input, shape index: {}]
  %s4 = inlined_call_operand.vmem [shape: f32[1,128], index: 4, kind: input, shape index: {}]
  %s5 = inlined_call_operand.vmem [shape: f32[1,128], index: 5, kind: input, shape index: {}]
  %s6 = inlined_call_operand.hbm [shape: f32[8,128], index: 6, kind: output, shape index: {}]
  %s7 = sld [smem:[#allocation0]]
  $region54: #{tpu_custom_call.1} parent=0
    _
  %s9 = ssub.s32 1, %s7
  %s10 = scalar_select 0, %s9, %s7
  $region1: #{tpu_custom_call.1} parent=0
    #allocation4 [shape = 'u8[4096]{0}', space=vmem, size = 0x1000, scoped, tag = 'input window, operand 0, single buffered']
    #allocation5 [shape = 's32[1]{0}', space=sflag, size = 0x4, scoped, tag = 'scoped memory for tpu_custom_call.1']
    #allocation6 [shape = 's32[1]{0}', space=sflag, size = 0x4, scoped, tag = 'scoped memory for tpu_custom_call.1']
    #allocation7 [shape = 'u8[65536]{0}', space=vmem, size = 0x10000, scoped, tag = 'input window, operand 1, single buffered']
    #allocation8 [shape = 's32[1]{0}', space=sflag, size = 0x4, scoped, tag = 'scoped memory for tpu_custom_call.1']
    #allocation9 [shape = 'u8[65536]{0}', space=vmem, size = 0x10000, scoped, tag = 'input window, operand 2, single buffered']
    #allocation10 [shape = 'u8[4096]{0}', space=vmem, size = 0x1000, scoped, tag = 'output window, operand 0, single buffered']
    %11 = vsyncpa [#allocation5], 0
    %12 = vsyncpa [#allocation8], 0
    %13 = vsyncpa [#allocation6], 0
    // Predicated region
    $region2: #{tpu_custom_call.1} parent=1 // pred_check
      _
    $region3: #{tpu_custom_call.1} parent=1 // pred_check_branch
      %15 = sbr.rel (0) target = $region5
    $region4: #{tpu_custom_call.1} parent=1 // pred_region
      %17 = vsyncadd [#allocation5], 0
      %s19 = sshll.u32 %s0, 4
      %s20 = int_to_ptr.hbm [resolvable:$true] %s19
      %s21 = sshll.u32 [#allocation4], 4
      %s22 = int_to_ptr.vmem [resolvable:$true] %s21
      %24 = dma.hbm_to_vmem [thread:$0]  %s20, 128, %s22, [#allocation5]
    $region5: #{tpu_custom_call.1} parent=1 // pred_fallthru
      _
    // Predicated region
    $region6: #{tpu_custom_call.1} parent=1 // pred_check
      _
    $region7: #{tpu_custom_call.1} parent=1 // pred_check_branch
      %26 = sbr.rel (0) target = $region9
    $region8: #{tpu_custom_call.1} parent=1 // pred_region
      %28 = vsyncadd [#allocation8], 0
      %s29 = sshll.u32 %s1, 4
      %s30 = int_to_ptr.hbm [resolvable:$true] %s29
      %s31 = sshll.u32 [#allocation7], 4
      %s32 = int_to_ptr.vmem [resolvable:$true] %s31
      %37 = dma.hbm_to_vmem [thread:$0]  %s30, 2048, %s32, [#allocation8], 128, 128, 8
    $region9: #{tpu_custom_call.1} parent=1 // pred_fallthru
      _
    // Predicated region
    $region10: #{tpu_custom_call.1} parent=1 // pred_check
      _
    $region11: #{tpu_custom_call.1} parent=1 // pred_check_branch
      %39 = sbr.rel (0) target = $region13
    $region12: #{tpu_custom_call.1} parent=1 // pred_region
      %41 = vsyncadd [#allocation8], 0
      %s42 = sshll.u32 %s2, 4
      %s43 = int_to_ptr.hbm [resolvable:$true] %s42
      %s44 = sshll.u32 [#allocation9], 4
      %s45 = int_to_ptr.vmem [resolvable:$true] %s44
      %50 = dma.hbm_to_vmem [thread:$0]  %s43, 2048, %s45, [#allocation8], 128, 128, 8
    $region13: #{tpu_custom_call.1} parent=1 // pred_fallthru
      _
    // Predicated region
    $region14: #{tpu_custom_call.1} parent=1 // pred_check
      _
    $region15: #{tpu_custom_call.1} parent=1 // pred_check_branch
      %52 = sbr.rel (0) target = $region17
    $region16: #{tpu_custom_call.1} parent=1 // pred_region
      _
    $region17: #{tpu_custom_call.1} parent=1 // pred_fallthru
      _
    // Predicated region
    $region18: #{tpu_custom_call.1} parent=1 // pred_check
      _
    $region19: #{tpu_custom_call.1} parent=1 // pred_check_branch
      %54 = sbr.rel (0) target = $region21
    $region20: #{tpu_custom_call.1} parent=1 // pred_region
      _
    $region21: #{tpu_custom_call.1} parent=1 // pred_fallthru
      _
    // Predicated region
    $region22: #{tpu_custom_call.1} parent=1 // pred_check
      _
    $region23: #{tpu_custom_call.1} parent=1 // pred_check_branch
      %56 = sbr.rel (0) target = $region25
    $region24: #{tpu_custom_call.1} parent=1 // pred_region
      _
    $region25: #{tpu_custom_call.1} parent=1 // pred_fallthru
      _
    // Predicated region
    $region26: #{tpu_custom_call.1} parent=1 // pred_check
      _
    $region27: #{tpu_custom_call.1} parent=1 // pred_check_branch
      %58 = sbr.rel (0) target = $region29
    $region28: #{tpu_custom_call.1} parent=1 // pred_region
      %60 = dma.done [#allocation5], 128
    $region29: #{tpu_custom_call.1} parent=1 // pred_fallthru
      _
    // Predicated region
    $region30: #{tpu_custom_call.1} parent=1 // pred_check
      _
    $region31: #{tpu_custom_call.1} parent=1 // pred_check_branch
      %62 = sbr.rel (0) target = $region33
    $region32: #{tpu_custom_call.1} parent=1 // pred_region
      %64 = dma.done [#allocation8], 2048
    $region33: #{tpu_custom_call.1} parent=1 // pred_fallthru
      _
    // Predicated region
    $region34: #{tpu_custom_call.1} parent=1 // pred_check
      _
    $region35: #{tpu_custom_call.1} parent=1 // pred_check_branch
      %66 = sbr.rel (0) target = $region37
    $region36: #{tpu_custom_call.1} parent=1 // pred_region
      %68 = dma.done [#allocation8], 2048
    $region37: #{tpu_custom_call.1} parent=1 // pred_fallthru
      _
    %p69 = scmp.eq.s32.totalorder 0, 0
    // Predicated region
    $region38: #{tpu_custom_call.1} parent=1 // pred_check
      %p70 = pneg %p69
    $region39: #{tpu_custom_call.1} parent=1 // pred_check_branch
      %72 = sbr.rel (%p70) target = $region41
    $region40: #{tpu_custom_call.1} parent=1 // pred_region
      %73 = vst [vmem:[#allocation2] sm:$0xff] 0.0
      %74 = vst [vmem:[#allocation3] sm:$0xff] 0.0
    $region41: #{tpu_custom_call.1} parent=1 // pred_fallthru
      _
    %v75 = vld [vmem:[#allocation4] sm:$0xff]
    %v76 = vld [vmem:[#allocation2] sm:$0xff]
    %v77 = vld [vmem:[#allocation7] sm:$0xff]
    %v78 = vld [vmem:[#allocation7 + $0x8] sm:$0xff]
    %v79 = vld [vmem:[#allocation7 + $0x10] sm:$0xff]
    %v80 = vld [vmem:[#allocation7 + $0x18] sm:$0xff]
    %v81 = vld [vmem:[#allocation7 + $0x20] sm:$0xff]
    %v82 = vld [vmem:[#allocation7 + $0x28] sm:$0xff]
    %v83 = vld [vmem:[#allocation7 + $0x30] sm:$0xff]
    %v84 = vld [vmem:[#allocation7 + $0x38] sm:$0xff]
    %v85 = vld [vmem:[#allocation7 + $0x40] sm:$0xff]
    %v86 = vld [vmem:[#allocation7 + $0x48] sm:$0xff]
    %v87 = vld [vmem:[#allocation7 + $0x50] sm:$0xff]
    %v88 = vld [vmem:[#allocation7 + $0x58] sm:$0xff]
    %v89 = vld [vmem:[#allocation7 + $0x60] sm:$0xff]
    %v90 = vld [vmem:[#allocation7 + $0x68] sm:$0xff]
    %v91 = vld [vmem:[#allocation7 + $0x70] sm:$0xff]
    %v92 = vld [vmem:[#allocation7 + $0x78] sm:$0xff]
    %93 = vmatpush.msra.mxu0 %v92
    %94 = vmatpush.msra.mxu0 %v91
    %95 = vmatpush.msra.mxu0 %v90
    %96 = vmatpush.msra.mxu0 %v89
    %97 = vmatpush.msra.mxu0 %v88
    %98 = vmatpush.msra.mxu0 %v87
    %99 = vmatpush.msra.mxu0 %v86
    %100 = vmatpush.msra.mxu0 %v85
    %101 = vmatpush.msra.mxu0 %v84
    %102 = vmatpush.msra.mxu0 %v83
    %103 = vmatpush.msra.mxu0 %v82
    %104 = vmatpush.msra.mxu0 %v81
    %105 = vmatpush.msra.mxu0 %v80
    %106 = vmatpush.msra.mxu0 %v79
    %107 = vmatpush.msra.mxu0 %v78
    %108 = vmatpush.msra.mxu0 %v77
    %109 = vmatmul.f32.gmra.mxu0 %v75
    %v110 = vpop.f32.mrf.mxu0
    %v111 = vadd.f32 0.0, %v110
    %112 = vdwg.mxu0
    %v113 = vadd.f32 %v76, %v111
    %114 = vst [vmem:[#allocation2] sm:$0xff] %v113
    %v115 = vld [vmem:[#allocation3] sm:$0xff]
    %v116 = vld [vmem:[%s3] sm:$0x1]
    %v118 = vperm.slane %v116, 0
    %v120 = vmul.f32 %v75, %v118
    %v121 = vld [vmem:[#allocation9] sm:$0xff]
    %v122 = vld [vmem:[#allocation9 + $0x8] sm:$0xff]
    %v123 = vld [vmem:[#allocation9 + $0x10] sm:$0xff]
    %v124 = vld [vmem:[#allocation9 + $0x18] sm:$0xff]
    %v125 = vld [vmem:[#allocation9 + $0x20] sm:$0xff]
    %v126 = vld [vmem:[#allocation9 + $0x28] sm:$0xff]
    %v127 = vld [vmem:[#allocation9 + $0x30] sm:$0xff]
    %v128 = vld [vmem:[#allocation9 + $0x38] sm:$0xff]
    %v129 = vld [vmem:[#allocation9 + $0x40] sm:$0xff]
    %v130 = vld [vmem:[#allocation9 + $0x48] sm:$0xff]
    %v131 = vld [vmem:[#allocation9 + $0x50] sm:$0xff]
    %v132 = vld [vmem:[#allocation9 + $0x58] sm:$0xff]
    %v133 = vld [vmem:[#allocation9 + $0x60] sm:$0xff]
    %v134 = vld [vmem:[#allocation9 + $0x68] sm:$0xff]
    %v135 = vld [vmem:[#allocation9 + $0x70] sm:$0xff]
    %v136 = vld [vmem:[#allocation9 + $0x78] sm:$0xff]
    %137 = vmatpush.msra.mxu0 %v136
    %138 = vmatpush.msra.mxu0 %v135
    %139 = vmatpush.msra.mxu0 %v134
    %140 = vmatpush.msra.mxu0 %v133
    %141 = vmatpush.msra.mxu0 %v132
    %142 = vmatpush.msra.mxu0 %v131
    %143 = vmatpush.msra.mxu0 %v130
    %144 = vmatpush.msra.mxu0 %v129
    %145 = vmatpush.msra.mxu0 %v128
    %146 = vmatpush.msra.mxu0 %v127
    %147 = vmatpush.msra.mxu0 %v126
    %148 = vmatpush.msra.mxu0 %v125
    %149 = vmatpush.msra.mxu0 %v124
    %150 = vmatpush.msra.mxu0 %v123
    %151 = vmatpush.msra.mxu0 %v122
    %152 = vmatpush.msra.mxu0 %v121
    %153 = vmatmul.f32.gmra.mxu0 %v120
    %v154 = vpop.f32.mrf.mxu0
    %v155 = vadd.f32 0.0, %v154
    %156 = vdwg.mxu0
    %v157 = vadd.f32 %v115, %v155
    %158 = vst [vmem:[#allocation3] sm:$0xff] %v157
    // Predicated region
    $region42: #{tpu_custom_call.1} parent=1 // pred_check
      %p159 = pneg %p69
    $region43: #{tpu_custom_call.1} parent=1 // pred_check_branch
      %161 = sbr.rel (%p159) target = $region45
    $region44: #{tpu_custom_call.1} parent=1 // pred_region
      %v162 = vld [vmem:[#allocation2] sm:$0xff]
      %v163 = vld [vmem:[%s4] sm:$0x1]
      %v164 = vld [vmem:[#allocation3] sm:$0xff]
      %v166 = vperm.slane %v163, 0
      %v168 = vmul.f32 %v166, %v164
      %v169 = vadd.f32 %v162, %v168
      %v170 = vld [vmem:[%s5] sm:$0x1]
      %v172 = vperm.slane %v170, 0
      %v174 = vadd.f32 %v169, %v172
      %175 = vst [vmem:[#allocation10] sm:$0xff] %v174
    $region45: #{tpu_custom_call.1} parent=1 // pred_fallthru
      _
    // Predicated region
    $region46: #{tpu_custom_call.1} parent=1 // pred_check
      _
    $region47: #{tpu_custom_call.1} parent=1 // pred_check_branch
      %177 = sbr.rel (0) target = $region49
    $region48: #{tpu_custom_call.1} parent=1 // pred_region
      %179 = vsyncadd [#allocation6], 0
      %s181 = sshll.u32 [#allocation10], 4
      %s182 = int_to_ptr.vmem [resolvable:$true] %s181
      %s183 = sshll.u32 %s6, 4
      %s184 = int_to_ptr.hbm [resolvable:$true] %s183
      %186 = dma.vmem_to_hbm [thread:$0]  %s182, 128, %s184, [#allocation6]
    $region49: #{tpu_custom_call.1} parent=1 // pred_fallthru
      _
    // Predicated region
    $region50: #{tpu_custom_call.1} parent=1 // pred_check
      _
    $region51: #{tpu_custom_call.1} parent=1 // pred_check_branch
      %188 = sbr.rel (0) target = $region53
    $region52: #{tpu_custom_call.1} parent=1 // pred_region
      %190 = dma.done [#allocation6], 128
    $region53: #{tpu_custom_call.1} parent=1 // pred_fallthru
      _
    %191 = vsyncpa [#allocation5], 1
    %192 = vsyncpa [#allocation8], 1
    %193 = vsyncpa [#allocation6], 1

</llo_original>
